<compile_context>
chip_gen: v5e
topology: v5e:2x2
jax: 0.10.0
libtpu: 0.0.40
codegen_flags: <defaults>
</compile_context>

<pallas_src>
import jax
import jax.numpy as jnp
from jax import lax
from jax.experimental import pallas as pl
from jax.experimental.pallas import tpu as pltpu


def _round_up(x, m):
    return ((x + m - 1) // m) * m


def _linear_kernel_fused(x_ref, w_ref, b_ref, o_ref):
    """Single-K-tile path: one MXU dot + bias + cast, no scratch."""
    acc = lax.dot_general(
        x_ref[...], w_ref[...],
        dimension_numbers=(((1,), (1,)), ((), ())),
        preferred_element_type=jnp.float32)
    o_ref[...] = (acc + b_ref[...].astype(jnp.float32)).astype(o_ref.dtype)


def _linear_kernel_acc(x_ref, w_ref, b_ref, o_ref, acc_ref):
    """General path: (tm, tn) output tile accumulated over the K grid axis."""
    k = pl.program_id(2)

    @pl.when(k == 0)
    def _zero():
        acc_ref[...] = jnp.zeros_like(acc_ref)

    # x tile: (tm, tk); w tile: (tn, tk) in PyTorch (out, in) layout.
    # Contract x's axis 1 against w's axis 1 -> (tm, tn); the MXU takes the
    # transposed operand for free, so no wrapper-side weight.T materialization.
    acc_ref[...] += lax.dot_general(
        x_ref[...], w_ref[...],
        dimension_numbers=(((1,), (1,)), ((), ())),
        preferred_element_type=jnp.float32)

    @pl.when(k == pl.num_programs(2) - 1)
    def _epilogue():
        o_ref[...] = (acc_ref[...] + b_ref[...].astype(jnp.float32)).astype(o_ref.dtype)


def linear_forward(x, weight, bias, *, tm=256, tn=256, tk=512, out_dtype=None):
    """nn.Linear forward: y = x @ weight.T + bias.

    x:      (B, in_dim)        activations
    weight: (out_dim, in_dim)  PyTorch layout (never transposed in HBM)
    bias:   (out_dim,)

    bf16 x / weight is fine on v6e / v7x (MXU peak); accumulation is f32.
    """
    B, in_dim = x.shape
    out_dim, in_dim_w = weight.shape
    assert in_dim_w == in_dim, "weight second dim must equal x feature dim"
    out_dtype = out_dtype or x.dtype

    # ---- tile sizes & padding (lane-dense: N, K -> x128; M -> x8) ----------
    tm = min(tm, _round_up(B, 8))
    tn = min(tn, _round_up(out_dim, 128))
    tk = min(tk, _round_up(in_dim, 128))
    M = _round_up(B, tm)
    N = _round_up(out_dim, tn)
    K = _round_up(in_dim, tk)

    # Zero-fill padding (padded K columns / N rows contribute 0 to the dot).
    if (M, K) != (B, in_dim):
        x = jnp.pad(x, ((0, M - B), (0, K - in_dim)))
    if (N, K) != (out_dim, in_dim):
        weight = jnp.pad(weight, ((0, N - out_dim), (0, K - in_dim)))
    b2 = bias.reshape(1, out_dim)
    if N != out_dim:
        b2 = jnp.pad(b2, ((0, 0), (0, N - out_dim)))

    gm, gn, gk = M // tm, N // tn, K // tk

    # VMEM budget: double-buffered input/bias/output tiles (+ f32 accumulator
    # on the reduction path), with 2x headroom, capped below v7x's 64 MiB.
    in_bytes = jnp.dtype(x.dtype).itemsize
    out_bytes = jnp.dtype(out_dtype).itemsize
    tile_bytes = (2 * in_bytes * (tm * tk + tn * tk + tn)
                  + 2 * out_bytes * tm * tn
                  + (4 * tm * tn if gk > 1 else 0))
    vmem_limit = int(min(max(2 * tile_bytes, 8 * 1024 * 1024), 48 * 1024 * 1024))

    cost = pl.CostEstimate(
        flops=2 * M * N * K,
        transcendentals=0,
        bytes_accessed=in_bytes * (M * K + N * K + N) + out_bytes * M * N,
    )

    if gk == 1:
        # ---- fast path: single K tile, 2-D fully-parallel grid, no scratch --
        grid_spec = pltpu.PrefetchScalarGridSpec(
            num_scalar_prefetch=0,
            grid=(gm, gn),
            in_specs=[
                pl.BlockSpec((tm, tk), lambda i, j: (i, 0)),   # x
                pl.BlockSpec((tn, tk), lambda i, j: (j, 0)),   # weight (out, in)
                pl.BlockSpec((1, tn), lambda i, j: (0, j)),    # bias
            ],
            out_specs=pl.BlockSpec((tm, tn), lambda i, j: (i, j)),
        )
        kernel = _linear_kernel_fused
        dim_sem = ("parallel", "parallel")
    else:
        # ---- general path: (M, N, K) grid, reduction axis last -------------
        grid_spec = pltpu.PrefetchScalarGridSpec(
            num_scalar_prefetch=0,
            grid=(gm, gn, gk),
            in_specs=[
                pl.BlockSpec((tm, tk), lambda i, j, k: (i, k)),   # x
                pl.BlockSpec((tn, tk), lambda i, j, k: (j, k)),   # weight
                pl.BlockSpec((1, tn), lambda i, j, k: (0, j)),    # bias
            ],
            out_specs=pl.BlockSpec((tm, tn), lambda i, j, k: (i, j)),
            scratch_shapes=[pltpu.VMEM((tm, tn), jnp.float32)],
        )
        kernel = _linear_kernel_acc
        dim_sem = ("parallel", "parallel", "arbitrary")

    out = pl.pallas_call(
        kernel,
        out_shape=jax.ShapeDtypeStruct((M, N), out_dtype),
        grid_spec=grid_spec,
        compiler_params=pltpu.CompilerParams(
            dimension_semantics=dim_sem,
            vmem_limit_bytes=vmem_limit,
        ),
        cost_estimate=cost,
    )(x, weight, b2)

    if (M, N) != (B, out_dim):
        out = out[:B, :out_dim]
    return out


if __name__ == "__main__":
    # Small shapes consistent with nn.Linear(input_dim, output_dim)
    batch, input_dim, output_dim = 8, 32, 16

    key = jax.random.PRNGKey(0)
    kx, kw, kb = jax.random.split(key, 3)

    # Parameter init mimicking PyTorch's default:
    # U(-1/sqrt(in_dim), 1/sqrt(in_dim)) for both weight and bias.
    bound = 1.0 / (input_dim ** 0.5)
    weight = jax.random.uniform(kw, (output_dim, input_dim),
                                minval=-bound, maxval=bound, dtype=jnp.float32)
    bias = jax.random.uniform(kb, (output_dim,),
                              minval=-bound, maxval=bound, dtype=jnp.float32)
    x = jax.random.normal(kx, (batch, input_dim), dtype=jnp.float32)

    out = linear_forward(x, weight, bias)
    jax.block_until_ready(out)

    # Correctness check vs. pure-JAX reference of the PyTorch forward
    ref = x @ weight.T + bias
    assert out.shape == (batch, output_dim)
    assert jnp.allclose(out, ref, atol=1e-5, rtol=1e-5)

    print("KERNEL_OK")
</pallas_src>

<mosaic_0001>
module attributes {stable_mosaic.version = 11 : i64} {
  func.func @_linear_kernel_fused(%arg0: i32, %arg1: i32, %arg2: memref<8x128xf32, #tpu.memory_space<vmem>>, %arg3: memref<128x128xf32, #tpu.memory_space<vmem>>, %arg4: memref<1x128xf32, #tpu.memory_space<vmem>>, %arg5: memref<8x128xf32, #tpu.memory_space<vmem>>) attributes {dimension_semantics = [#tpu.dimension_semantics<parallel>, #tpu.dimension_semantics<parallel>], iteration_bounds = array<i64: 1, 1>, scalar_prefetch = 0 : i64, scratch_operands = 0 : i64, tpu.core_type = #tpu.core_type<tc>, window_params = [{transform_indices = @transform_0, window_bounds = array<i64: 8, 128>}, {transform_indices = @transform_1, window_bounds = array<i64: 128, 128>}, {transform_indices = @transform_2, window_bounds = array<i64: 1, 128>}, {transform_indices = @transform_3, window_bounds = array<i64: 8, 128>}]} {
    %c0 = arith.constant 0 : index
    %c0_0 = arith.constant 0 : index
    %0 = vector.load %arg2[%c0, %c0_0] : memref<8x128xf32, #tpu.memory_space<vmem>>, vector<8x128xf32>
    %c0_1 = arith.constant 0 : index
    %c0_2 = arith.constant 0 : index
    %1 = vector.load %arg3[%c0_1, %c0_2] : memref<128x128xf32, #tpu.memory_space<vmem>>, vector<128x128xf32>
    %cst = arith.constant dense<0.000000e+00> : vector<8x128xf32>
    %2 = tpu.matmul %0, %1, %cst {dimension_numbers = #tpu.dot_dimension_numbers<[1], [1], [0], [0], [0, 0, 1, 0], [], []>} : vector<8x128xf32>, vector<128x128xf32>, vector<8x128xf32> -> vector<8x128xf32>
    %c0_3 = arith.constant 0 : index
    %c0_4 = arith.constant 0 : index
    %3 = vector.load %arg4[%c0_3, %c0_4] : memref<1x128xf32, #tpu.memory_space<vmem>>, vector<1x128xf32>
    %4 = vector.broadcast %3 : vector<1x128xf32> to vector<8x128xf32>
    %5 = arith.addf %2, %4 : vector<8x128xf32>
    %c0_5 = arith.constant 0 : index
    %c0_6 = arith.constant 0 : index
    %6 = vector.load %arg5[%c0_5, %c0_6] : memref<8x128xf32, #tpu.memory_space<vmem>>, vector<8x128xf32>
    tpu.vector_store %arg5[%c0_5, %c0_6], %5 {strides = array<i32>} : memref<8x128xf32, #tpu.memory_space<vmem>>, vector<8x128xf32>,
    return
  }
  func.func @transform_0(%arg0: i32, %arg1: i32) -> (i32, i32) {
    %c0_i32 = arith.constant 0 : i32
    %c0_i32_0 = arith.constant 0 : i32
    return %arg0, %c0_i32 : i32, i32
  }
  func.func @transform_1(%arg0: i32, %arg1: i32) -> (i32, i32) {
    %c0_i32 = arith.constant 0 : i32
    %c0_i32_0 = arith.constant 0 : i32
    return %arg1, %c0_i32 : i32, i32
  }
  func.func @transform_2(%arg0: i32, %arg1: i32) -> (i32, i32) {
    %c0_i32 = arith.constant 0 : i32
    %c0_i32_0 = arith.constant 0 : i32
    return %c0_i32, %arg1 : i32, i32
  }
  func.func @transform_3(%arg0: i32, %arg1: i32) -> (i32, i32) {
    %c0_i32 = arith.constant 0 : i32
    return %arg0, %arg1 : i32, i32
  }
}

</mosaic_0001>

<llo_original>
// kernel: tpu_custom_call.1
$region0: #{tpu_custom_call.1}
  #allocation0 [shape = 'u32[]', space=smem, size = 0x4, offset = 0x4, fixed_abs, tag = 'smem constant byte address 0x4 - core index']
  #allocation1 [shape = 'u32[72,128]{1,0:T(1,128)}', space=vmem, size = 0x9000, scoped, tag = 'internal scratch']
  %s0 = inlined_call_operand.hbm [shape: f32[8,128], index: 0, kind: input, shape index: {}]
  %s1 = inlined_call_operand.hbm [shape: f32[128,128], index: 1, kind: input, shape index: {}]
  %s2 = inlined_call_operand.vmem [shape: f32[1,128], index: 2, kind: input, shape index: {}]
  %s3 = inlined_call_operand.hbm [shape: f32[8,128], index: 3, kind: output, shape index: {}]
  %s4 = sld [smem:[#allocation0]]
  $region30: #{tpu_custom_call.1} parent=0
    _
  %s6 = ssub.s32 1, %s4
  %s7 = scalar_select 0, %s6, %s4
  $region1: #{tpu_custom_call.1} parent=0
    #allocation2 [shape = 'u8[4096]{0}', space=vmem, size = 0x1000, scoped, tag = 'input window, operand 0, single buffered']
    #allocation3 [shape = 's32[1]{0}', space=sflag, size = 0x4, scoped, tag = 'scoped memory for tpu_custom_call.1']
    #allocation4 [shape = 's32[1]{0}', space=sflag, size = 0x4, scoped, tag = 'scoped memory for tpu_custom_call.1']
    #allocation5 [shape = 'u8[65536]{0}', space=vmem, size = 0x10000, scoped, tag = 'input window, operand 1, single buffered']
    #allocation6 [shape = 's32[1]{0}', space=sflag, size = 0x4, scoped, tag = 'scoped memory for tpu_custom_call.1']
    #allocation7 [shape = 'u8[4096]{0}', space=vmem, size = 0x1000, scoped, tag = 'output window, operand 0, single buffered']
    %8 = vsyncpa [#allocation3], 0
    %9 = vsyncpa [#allocation6], 0
    %10 = vsyncpa [#allocation4], 0
    // Predicated region
    $region2: #{tpu_custom_call.1} parent=1 // pred_check
      _
    $region3: #{tpu_custom_call.1} parent=1 // pred_check_branch
      %12 = sbr.rel (0) target = $region5
    $region4: #{tpu_custom_call.1} parent=1 // pred_region
      %14 = vsyncadd [#allocation3], 0
      %s16 = sshll.u32 %s0, 4
      %s17 = int_to_ptr.hbm [resolvable:$true] %s16
      %s18 = sshll.u32 [#allocation2], 4
      %s19 = int_to_ptr.vmem [resolvable:$true] %s18
      %21 = dma.hbm_to_vmem [thread:$0]  %s17, 128, %s19, [#allocation3]
    $region5: #{tpu_custom_call.1} parent=1 // pred_fallthru
      _
    // Predicated region
    $region6: #{tpu_custom_call.1} parent=1 // pred_check
      _
    $region7: #{tpu_custom_call.1} parent=1 // pred_check_branch
      %23 = sbr.rel (0) target = $region9
    $region8: #{tpu_custom_call.1} parent=1 // pred_region
      %25 = vsyncadd [#allocation6], 0
      %s26 = sshll.u32 %s1, 4
      %s27 = int_to_ptr.hbm [resolvable:$true] %s26
      %s28 = sshll.u32 [#allocation5], 4
      %s29 = int_to_ptr.vmem [resolvable:$true] %s28
      %34 = dma.hbm_to_vmem [thread:$0]  %s27, 2048, %s29, [#allocation6], 128, 128, 8
    $region9: #{tpu_custom_call.1} parent=1 // pred_fallthru
      _
    // Predicated region
    $region10: #{tpu_custom_call.1} parent=1 // pred_check
      _
    $region11: #{tpu_custom_call.1} parent=1 // pred_check_branch
      %36 = sbr.rel (0) target = $region13
    $region12: #{tpu_custom_call.1} parent=1 // pred_region
      _
    $region13: #{tpu_custom_call.1} parent=1 // pred_fallthru
      _
    // Predicated region
    $region14: #{tpu_custom_call.1} parent=1 // pred_check
      _
    $region15: #{tpu_custom_call.1} parent=1 // pred_check_branch
      %38 = sbr.rel (0) target = $region17
    $region16: #{tpu_custom_call.1} parent=1 // pred_region
      %40 = dma.done [#allocation3], 128
    $region17: #{tpu_custom_call.1} parent=1 // pred_fallthru
      _
    // Predicated region
    $region18: #{tpu_custom_call.1} parent=1 // pred_check
      _
    $region19: #{tpu_custom_call.1} parent=1 // pred_check_branch
      %42 = sbr.rel (0) target = $region21
    $region20: #{tpu_custom_call.1} parent=1 // pred_region
      %44 = dma.done [#allocation6], 2048
    $region21: #{tpu_custom_call.1} parent=1 // pred_fallthru
      _
    %v45 = vld [vmem:[#allocation2] sm:$0xff]
    %v46 = vld [vmem:[#allocation5] sm:$0xff]
    %v47 = vld [vmem:[#allocation5 + $0x8] sm:$0xff]
    %v48 = vld [vmem:[#allocation5 + $0x10] sm:$0xff]
    %v49 = vld [vmem:[#allocation5 + $0x18] sm:$0xff]
    %v50 = vld [vmem:[#allocation5 + $0x20] sm:$0xff]
    %v51 = vld [vmem:[#allocation5 + $0x28] sm:$0xff]
    %v52 = vld [vmem:[#allocation5 + $0x30] sm:$0xff]
    %v53 = vld [vmem:[#allocation5 + $0x38] sm:$0xff]
    %v54 = vld [vmem:[#allocation5 + $0x40] sm:$0xff]
    %v55 = vld [vmem:[#allocation5 + $0x48] sm:$0xff]
    %v56 = vld [vmem:[#allocation5 + $0x50] sm:$0xff]
    %v57 = vld [vmem:[#allocation5 + $0x58] sm:$0xff]
    %v58 = vld [vmem:[#allocation5 + $0x60] sm:$0xff]
    %v59 = vld [vmem:[#allocation5 + $0x68] sm:$0xff]
    %v60 = vld [vmem:[#allocation5 + $0x70] sm:$0xff]
    %v61 = vld [vmem:[#allocation5 + $0x78] sm:$0xff]
    %v62 = vld [vmem:[%s2] sm:$0x1]
    %v64 = vperm.slane %v62, 0
    %66 = vmatpush.xpose.msra.mxu0 %v61
    %67 = vmatpush.xpose.msra.mxu0 %v60
    %68 = vmatpush.xpose.msra.mxu0 %v59
    %69 = vmatpush.xpose.msra.mxu0 %v58
    %70 = vmatpush.xpose.msra.mxu0 %v57
    %71 = vmatpush.xpose.msra.mxu0 %v56
    %72 = vmatpush.xpose.msra.mxu0 %v55
    %73 = vmatpush.xpose.msra.mxu0 %v54
    %74 = vmatpush.xpose.msra.mxu0 %v53
    %75 = vmatpush.xpose.msra.mxu0 %v52
    %76 = vmatpush.xpose.msra.mxu0 %v51
    %77 = vmatpush.xpose.msra.mxu0 %v50
    %78 = vmatpush.xpose.msra.mxu0 %v49
    %79 = vmatpush.xpose.msra.mxu0 %v48
    %80 = vmatpush.xpose.msra.mxu0 %v47
    %81 = vmatpush.xpose.msra.mxu0 %v46
    %82 = vmatmul.f32.gmra.mxu0 %v45
    %v83 = vpop.f32.mrf.mxu0
    %v84 = vadd.f32 %v64, %v83
    %85 = vdwg.mxu0
    %86 = vst [vmem:[#allocation7] sm:$0xff] %v84
    // Predicated region
    $region22: #{tpu_custom_call.1} parent=1 // pred_check
      _
    $region23: #{tpu_custom_call.1} parent=1 // pred_check_branch
      %88 = sbr.rel (0) target = $region25
    $region24: #{tpu_custom_call.1} parent=1 // pred_region
      %90 = vsyncadd [#allocation4], 0
      %s92 = sshll.u32 [#allocation7], 4
      %s93 = int_to_ptr.vmem [resolvable:$true] %s92
      %s94 = sshll.u32 %s3, 4
      %s95 = int_to_ptr.hbm [resolvable:$true] %s94
      %97 = dma.vmem_to_hbm [thread:$0]  %s93, 128, %s95, [#allocation4]
    $region25: #{tpu_custom_call.1} parent=1 // pred_fallthru
      _
    // Predicated region
    $region26: #{tpu_custom_call.1} parent=1 // pred_check
      _
    $region27: #{tpu_custom_call.1} parent=1 // pred_check_branch
      %99 = sbr.rel (0) target = $region29
    $region28: #{tpu_custom_call.1} parent=1 // pred_region
      %101 = dma.done [#allocation4], 128
    $region29: #{tpu_custom_call.1} parent=1 // pred_fallthru
      _
    %102 = vsyncpa [#allocation3], 1
    %103 = vsyncpa [#allocation6], 1
    %104 = vsyncpa [#allocation4], 1

</llo_original>
